<compile_context>
chip_gen: v5e
topology: v5e:2x2
jax: 0.10.0
libtpu: 0.0.40
codegen_flags: <defaults>
</compile_context>

<pallas_src>
import functools

import jax
import jax.numpy as jnp
from jax import lax
from jax.experimental import pallas as pl
from jax.experimental.pallas import tpu as pltpu


def _self_output_kernel(x_ref, res_ref, w_ref, b_ref, g_ref, beta_ref, o_ref, *, eps):
    # x_ref:    (tm, H)  hidden_states row tile (activation dtype)
    # res_ref:  (tm, H)  residual row tile (activation dtype)
    # w_ref:    (H, H)   dense weight, already transposed to (in, out), VMEM-resident
    # b_ref:    (1, H)   dense bias          (VMEM-resident)
    # g_ref:    (1, H)   LayerNorm weight    (VMEM-resident)
    # beta_ref: (1, H)   LayerNorm bias      (VMEM-resident)
    x = x_ref[...]
    w = w_ref[...]
    if x.dtype != w.dtype:
        # e.g. f32 activations with a bf16 weight feed -> bf16 MXU path.
        x = x.astype(w.dtype)

    # Plain x @ w (weight is (K, N)); accumulate in f32 on the MXU.
    h = lax.dot_general(
        x, w,
        dimension_numbers=(((1,), (0,)), ((), ())),
        preferred_element_type=jnp.float32,
    )

    # Dropout: eval mode -> identity.
    # TODO(synk): training-mode dropout (stochastic masking) not implemented.

    # Bias folded into the residual add, all in f32.
    h = h + (res_ref[...].astype(jnp.float32) + b_ref[...].astype(jnp.float32))

    # DebertaLayerNorm: f32 math, biased variance over the last dim.
    # Single-pass stats: var = E[h^2] - E[h]^2 (clamped for safety).
    mean = jnp.mean(h, axis=-1, keepdims=True)
    mean_sq = jnp.mean(h * h, axis=-1, keepdims=True)
    var = jnp.maximum(mean_sq - mean * mean, 0.0)
    rstd = lax.rsqrt(var + eps)

    y = (g_ref[...].astype(jnp.float32) * ((h - mean) * rstd)
         + beta_ref[...].astype(jnp.float32))
    o_ref[...] = y.astype(o_ref.dtype)


def _vmem_capacity_bytes():
    """Best-effort physical VMEM per TensorCore; conservative (v7x) fallback."""
    try:
        cap = int(pltpu.get_tpu_info().vmem_capacity_bytes)
        if cap > 0:
            return cap
    except Exception:
        pass
    return 64 * 1024 * 1024


def _pick_row_tile(M, H, act_bytes, w_bytes, tm_pref, tile_budget):
    """Pick a row tile that is a multiple of 8, divides M (no padding copies),
    fits the VMEM budget, and leaves >= 2 grid steps for v7x's two TensorCores."""
    # Per-row VMEM cost: x/res/out double-buffered + ~4 f32 LN temporaries.
    per_row = H * (3 * 2 * act_bytes + 4 * 4)
    avail = tile_budget - H * H * w_bytes - 3 * H * 4
    tm_cap = max(8, (avail // per_row) // 8 * 8) if avail > per_row * 8 else 8
    tm_pref = max(8, min(tm_pref, tm_cap))

    if M <= tm_pref:
        # Whole thing fits in one block; split in two when cheap so the grid axis
        # can still shard across both v7x TensorCores.
        if M >= 16 and M % 16 == 0:
            return M // 2, 0
        return M, 0   # block == full array dims is always legal

    upper = max(8, min(tm_pref, (M // 2) // 8 * 8))
    for t in range(upper, 7, -8):
        if M % t == 0:
            return t, 0

    # No clean divisor: fall back to padding the row dimension.
    # TODO(synk): masked ragged-tail block instead of a padded activation copy.
    pad = (-M) % upper
    return upper, pad


def deberta_self_output(hidden_states, input_tensor, dense_w, dense_b,
                        ln_w, ln_b, *, eps=1e-7, tm=None, use_bf16_matmul=True):
    """Fused dense + (eval) dropout + residual + DebertaLayerNorm.

    Shapes: hidden_states / input_tensor [B, S, H]; dense_w [H, H] (PyTorch (out, in));
    dense_b / ln_w / ln_b [H].

    use_bf16_matmul=True casts the matmul operands to bf16 (f32 accumulation / LN math
    are kept) -> bf16 MXU path on all generations, half the resident weight VMEM.
    Set False for an exact matmul in the activation dtype.
    """
    B, S, H = hidden_states.shape
    M = B * S
    act_dtype = hidden_states.dtype

    # MXU-native weight feed: (in, out) layout, optional bf16 cast (one-time XLA ops).
    mm_dtype = jnp.bfloat16 if use_bf16_matmul else act_dtype
    w_t = dense_w.T.astype(mm_dtype)

    vmem_cap = _vmem_capacity_bytes()
    big_vmem = vmem_cap >= 100 * 1024 * 1024           # v5e / v6e (128 MiB parts)
    vmem_limit = (64 if big_vmem else 48) * 1024 * 1024  # leave headroom on v7x
    tile_budget = vmem_limit - 8 * 1024 * 1024           # Mosaic internal scratch slack

    act_bytes = jnp.dtype(act_dtype).itemsize
    w_bytes = jnp.dtype(mm_dtype).itemsize
    if tm is None:
        if act_dtype == jnp.bfloat16:
            tm_pref = 1024 if big_vmem else 512
        else:
            tm_pref = 512 if big_vmem else 256
        tm, pad = _pick_row_tile(M, H, act_bytes, w_bytes, tm_pref, tile_budget)
    else:
        tm = min(tm, M)
        assert tm == M or tm % 8 == 0, "row tile must be a multiple of 8"
        pad = (-M) % tm

    Mp = M + pad
    x2d = hidden_states.reshape(M, H)
    r2d = input_tensor.reshape(M, H)
    if pad:
        x2d = jnp.pad(x2d, ((0, pad), (0, 0)))
        r2d = jnp.pad(r2d, ((0, pad), (0, 0)))

    b2d = dense_b.reshape(1, H)
    g2d = ln_w.reshape(1, H)
    beta2d = ln_b.reshape(1, H)

    # Constant operands: whole array resident in VMEM, DMA'd once, single-buffered.
    resident = pl.BlockSpec(memory_space=pltpu.MemorySpace.VMEM)

    out = pl.pallas_call(
        functools.partial(_self_output_kernel, eps=eps),
        out_shape=jax.ShapeDtypeStruct((Mp, H), act_dtype),
        grid_spec=pltpu.PrefetchScalarGridSpec(
            num_scalar_prefetch=0,
            grid=(Mp // tm,),
            in_specs=[
                pl.BlockSpec((tm, H), lambda i: (i, 0)),   # hidden_states rows
                pl.BlockSpec((tm, H), lambda i: (i, 0)),   # residual rows
                resident,                                   # dense weight (in, out)
                resident,                                   # dense bias
                resident,                                   # LayerNorm weight
                resident,                                   # LayerNorm bias
            ],
            out_specs=pl.BlockSpec((tm, H), lambda i: (i, 0)),
        ),
        compiler_params=pltpu.CompilerParams(
            dimension_semantics=("parallel",),
            vmem_limit_bytes=vmem_limit,
        ),
    )(x2d, r2d, w_t, b2d, g2d, beta2d)

    if pad:
        out = out[:M]
    return out.reshape(B, S, H)


def _reference(hidden_states, input_tensor, dense_w, dense_b, ln_w, ln_b, eps=1e-7):
    h = hidden_states @ dense_w.T + dense_b
    h = h + input_tensor
    h = h.astype(jnp.float32)
    mean = h.mean(-1, keepdims=True)
    var = ((h - mean) ** 2).mean(-1, keepdims=True)
    h = (h - mean) / jnp.sqrt(var + eps)
    return ln_w * h + ln_b


if __name__ == "__main__":
    key = jax.random.PRNGKey(0)
    B, S, H = 2, 8, 32
    eps = 1e-7

    k1, k2, k3, k4 = jax.random.split(key, 4)
    hidden_states = jax.random.normal(k1, (B, S, H), dtype=jnp.float32)
    input_tensor = jax.random.normal(k2, (B, S, H), dtype=jnp.float32)

    # Deterministic parameter init (shapes from nn.Linear(H, H) + DebertaLayerNorm(H)).
    dense_w = jax.random.normal(k3, (H, H), dtype=jnp.float32) * (1.0 / H ** 0.5)
    dense_b = jax.random.normal(k4, (H,), dtype=jnp.float32) * 0.02
    ln_w = jnp.ones((H,), dtype=jnp.float32)
    ln_b = jnp.zeros((H,), dtype=jnp.float32)

    ref = _reference(hidden_states, input_tensor, dense_w, dense_b, ln_w, ln_b, eps)

    # Exact (f32 matmul) path: tight tolerance.
    out_exact = deberta_self_output(hidden_states, input_tensor, dense_w, dense_b,
                                    ln_w, ln_b, eps=eps, use_bf16_matmul=False)
    out_exact = jax.block_until_ready(out_exact)
    assert out_exact.shape == (B, S, H)
    assert jnp.allclose(out_exact, ref, atol=1e-5, rtol=1e-5), "mismatch (f32 path)"

    # Default bf16-MXU path: loose tolerance (bf16 matmul rounding only).
    out_bf16 = deberta_self_output(hidden_states, input_tensor, dense_w, dense_b,
                                   ln_w, ln_b, eps=eps)
    out_bf16 = jax.block_until_ready(out_bf16)
    assert jnp.allclose(out_bf16, ref, atol=5e-2, rtol=5e-2), "mismatch (bf16 path)"

    print("KERNEL_OK")
</pallas_src>

<mosaic_0001>
module attributes {stable_mosaic.version = 11 : i64} {
  func.func @_self_output_kernel(%arg0: i32, %arg1: memref<8x32xf32, #tpu.memory_space<vmem>>, %arg2: memref<8x32xf32, #tpu.memory_space<vmem>>, %arg3: memref<32x32xf32, #tpu.memory_space<vmem>>, %arg4: memref<1x32xf32, #tpu.memory_space<vmem>>, %arg5: memref<1x32xf32, #tpu.memory_space<vmem>>, %arg6: memref<1x32xf32, #tpu.memory_space<vmem>>, %arg7: memref<8x32xf32, #tpu.memory_space<vmem>>) attributes {dimension_semantics = [#tpu.dimension_semantics<parallel>], iteration_bounds = array<i64: 2>, scalar_prefetch = 0 : i64, scratch_operands = 0 : i64, tpu.core_type = #tpu.core_type<tc>, window_params = [{transform_indices = @transform_0, window_bounds = array<i64: 8, 32>}, {transform_indices = @transform_1, window_bounds = array<i64: 8, 32>}, {pipeline_mode = #tpu.pipeline_mode<synchronous>, transform_indices = @transform_2, window_bounds = array<i64: 32, 32>}, {pipeline_mode = #tpu.pipeline_mode<synchronous>, transform_indices = @transform_3, window_bounds = array<i64: 1, 32>}, {pipeline_mode = #tpu.pipeline_mode<synchronous>, transform_indices = @transform_4, window_bounds = array<i64: 1, 32>}, {pipeline_mode = #tpu.pipeline_mode<synchronous>, transform_indices = @transform_5, window_bounds = array<i64: 1, 32>}, {transform_indices = @transform_6, window_bounds = array<i64: 8, 32>}]} {
    %c0 = arith.constant 0 : index
    %c0_0 = arith.constant 0 : index
    %0 = vector.load %arg1[%c0, %c0_0] : memref<8x32xf32, #tpu.memory_space<vmem>>, vector<8x32xf32>
    %c0_1 = arith.constant 0 : index
    %c0_2 = arith.constant 0 : index
    %1 = vector.load %arg3[%c0_1, %c0_2] : memref<32x32xf32, #tpu.memory_space<vmem>>, vector<32x32xf32>
    %cst = arith.constant dense<0.000000e+00> : vector<8x32xf32>
    %2 = tpu.matmul %0, %1, %cst {dimension_numbers = #tpu.dot_dimension_numbers<[1], [0], [0], [1], [0, 0, 1, 1], [], []>} : vector<8x32xf32>, vector<32x32xf32>, vector<8x32xf32> -> vector<8x32xf32>
    %c0_3 = arith.constant 0 : index
    %c0_4 = arith.constant 0 : index
    %3 = vector.load %arg2[%c0_3, %c0_4] : memref<8x32xf32, #tpu.memory_space<vmem>>, vector<8x32xf32>
    %c0_5 = arith.constant 0 : index
    %c0_6 = arith.constant 0 : index
    %4 = vector.load %arg4[%c0_5, %c0_6] : memref<1x32xf32, #tpu.memory_space<vmem>>, vector<1x32xf32>
    %5 = vector.broadcast %4 : vector<1x32xf32> to vector<8x32xf32>
    %6 = arith.addf %3, %5 : vector<8x32xf32>
    %7 = arith.addf %2, %6 : vector<8x32xf32>
    %cst_7 = arith.constant dense<0.000000e+00> : vector<8xf32>
    %8 = vector.multi_reduction <add>, %7, %cst_7 [1] : vector<8x32xf32> to vector<8xf32>
    %9 = vector.shape_cast %8 : vector<8xf32> to vector<8x1xf32>
    %cst_8 = arith.constant 3.200000e+01 : f32
    %10 = vector.broadcast %cst_8 : f32 to vector<8x1xf32>
    %11 = arith.divf %9, %10 : vector<8x1xf32>
    %12 = arith.mulf %7, %7 : vector<8x32xf32>
    %cst_9 = arith.constant dense<0.000000e+00> : vector<8xf32>
    %13 = vector.multi_reduction <add>, %12, %cst_9 [1] : vector<8x32xf32> to vector<8xf32>
    %14 = vector.shape_cast %13 : vector<8xf32> to vector<8x1xf32>
    %cst_10 = arith.constant 3.200000e+01 : f32
    %15 = vector.broadcast %cst_10 : f32 to vector<8x1xf32>
    %16 = arith.divf %14, %15 : vector<8x1xf32>
    %17 = arith.mulf %11, %11 : vector<8x1xf32>
    %18 = arith.subf %16, %17 : vector<8x1xf32>
    %cst_11 = arith.constant 0.000000e+00 : f32
    %19 = vector.broadcast %cst_11 : f32 to vector<8x1xf32>
    %20 = arith.maximumf %18, %19 : vector<8x1xf32>
    %cst_12 = arith.constant 1.000000e-07 : f32
    %21 = vector.broadcast %cst_12 : f32 to vector<8x1xf32>
    %22 = arith.addf %20, %21 : vector<8x1xf32>
    %23 = math.rsqrt %22 : vector<8x1xf32>
    %c0_13 = arith.constant 0 : index
    %c0_14 = arith.constant 0 : index
    %24 = vector.load %arg5[%c0_13, %c0_14] : memref<1x32xf32, #tpu.memory_space<vmem>>, vector<1x32xf32>
    %25 = vector.broadcast %11 : vector<8x1xf32> to vector<8x32xf32>
    %26 = arith.subf %7, %25 : vector<8x32xf32>
    %27 = vector.broadcast %23 : vector<8x1xf32> to vector<8x32xf32>
    %28 = arith.mulf %26, %27 : vector<8x32xf32>
    %29 = vector.broadcast %24 : vector<1x32xf32> to vector<8x32xf32>
    %30 = arith.mulf %29, %28 : vector<8x32xf32>
    %c0_15 = arith.constant 0 : index
    %c0_16 = arith.constant 0 : index
    %31 = vector.load %arg6[%c0_15, %c0_16] : memref<1x32xf32, #tpu.memory_space<vmem>>, vector<1x32xf32>
    %32 = vector.broadcast %31 : vector<1x32xf32> to vector<8x32xf32>
    %33 = arith.addf %30, %32 : vector<8x32xf32>
    %c0_17 = arith.constant 0 : index
    %c0_18 = arith.constant 0 : index
    %34 = vector.load %arg7[%c0_17, %c0_18] : memref<8x32xf32, #tpu.memory_space<vmem>>, vector<8x32xf32>
    tpu.vector_store %arg7[%c0_17, %c0_18], %33 {strides = array<i32>} : memref<8x32xf32, #tpu.memory_space<vmem>>, vector<8x32xf32>,
    return
  }
  func.func @transform_0(%arg0: i32) -> (i32, i32) {
    %c0_i32 = arith.constant 0 : i32
    %c0_i32_0 = arith.constant 0 : i32
    return %arg0, %c0_i32 : i32, i32
  }
  func.func @transform_1(%arg0: i32) -> (i32, i32) {
    %c0_i32 = arith.constant 0 : i32
    %c0_i32_0 = arith.constant 0 : i32
    return %arg0, %c0_i32 : i32, i32
  }
  func.func @transform_2(%arg0: i32) -> (i32, i32) {
    %c0_i32 = arith.constant 0 : i32
    %c0_i32_0 = arith.constant 0 : i32
    %c0_i32_1 = arith.constant 0 : i32
    return %c0_i32, %c0_i32_0 : i32, i32
  }
  func.func @transform_3(%arg0: i32) -> (i32, i32) {
    %c0_i32 = arith.constant 0 : i32
    %c0_i32_0 = arith.constant 0 : i32
    %c0_i32_1 = arith.constant 0 : i32
    return %c0_i32, %c0_i32_0 : i32, i32
  }
  func.func @transform_4(%arg0: i32) -> (i32, i32) {
    %c0_i32 = arith.constant 0 : i32
    %c0_i32_0 = arith.constant 0 : i32
    %c0_i32_1 = arith.constant 0 : i32
    return %c0_i32, %c0_i32_0 : i32, i32
  }
  func.func @transform_5(%arg0: i32) -> (i32, i32) {
    %c0_i32 = arith.constant 0 : i32
    %c0_i32_0 = arith.constant 0 : i32
    %c0_i32_1 = arith.constant 0 : i32
    return %c0_i32, %c0_i32_0 : i32, i32
  }
  func.func @transform_6(%arg0: i32) -> (i32, i32) {
    %c0_i32 = arith.constant 0 : i32
    %c0_i32_0 = arith.constant 0 : i32
    return %arg0, %c0_i32 : i32, i32
  }
}

</mosaic_0001>

<llo_original>
// kernel: tpu_custom_call.1
$region0: #{tpu_custom_call.1}
  #allocation0 [shape = 'u32[]', space=smem, size = 0x4, offset = 0x4, fixed_abs, tag = 'smem constant byte address 0x4 - core index']
  #allocation1 [shape = 'u32[72,128]{1,0:T(1,128)}', space=vmem, size = 0x9000, scoped, tag = 'internal scratch']
  %s0 = inlined_call_operand.hbm [shape: f32[16,32], index: 0, kind: input, shape index: {}]
  %s1 = inlined_call_operand.hbm [shape: f32[16,32], index: 1, kind: input, shape index: {}]
  %s2 = inlined_call_operand.hbm [shape: f32[32,32], index: 2, kind: input, shape index: {}]
  %s3 = inlined_call_operand.vmem [shape: f32[1,32], index: 3, kind: input, shape index: {}]
  %s4 = inlined_call_operand.vmem [shape: f32[1,32], index: 4, kind: input, shape index: {}]
  %s5 = inlined_call_operand.vmem [shape: f32[1,32], index: 5, kind: input, shape index: {}]
  %s6 = inlined_call_operand.hbm [shape: f32[16,32], index: 6, kind: output, shape index: {}]
  %s7 = sld [smem:[#allocation0]]
  $region69: #{tpu_custom_call.1} parent=0
    _
  %s9 = ssub.s32 1, %s7
  %s10 = scalar_select 0, %s9, %s7
  $region1: #{tpu_custom_call.1} parent=0
    #allocation2 [shape = 'u8[8192]{0}', space=vmem, size = 0x2000, scoped, tag = 'input window, operand 0']
    #allocation3 [shape = 's32[2]{0}', space=sflag, size = 0x8, scoped, tag = 'scoped memory for tpu_custom_call.1']
    #allocation4 [shape = 's32[2]{0}', space=sflag, size = 0x8, scoped, tag = 'scoped memory for tpu_custom_call.1']
    #allocation5 [shape = 'u8[8192]{0}', space=vmem, size = 0x2000, scoped, tag = 'input window, operand 1']
    #allocation6 [shape = 's32[2]{0}', space=sflag, size = 0x8, scoped, tag = 'scoped memory for tpu_custom_call.1']
    #allocation7 [shape = 'u8[16384]{0}', space=vmem, size = 0x4000, scoped, tag = 'input window, operand 2, single buffered']
    #allocation8 [shape = 'u8[8192]{0}', space=vmem, size = 0x2000, scoped, tag = 'output window, operand 0']
    %11 = vsyncpa [#allocation3], 0
    %s12 = scalar_lea.sflag [#allocation3], 1
    %13 = vsyncpa %s12, 0
    %14 = vsyncpa [#allocation6], 0
    %s15 = scalar_lea.sflag [#allocation6], 1
    %16 = vsyncpa %s15, 0
    %17 = vsyncpa [#allocation4], 0
    %s18 = scalar_lea.sflag [#allocation4], 1
    %19 = vsyncpa %s18, 0
    loop: start=0, step=1, limit=4
    $region2: #{tpu_custom_call.1} parent=1 // loop_pre_header
      _
    $region3: #{tpu_custom_call.1} parent=1 // loop_header
      %s21 = sphi 0, %s25
      %p22 = scmp.ge.s32.totalorder %s21, 4
      %s31 = sphi 0, %s33
      %s34 = sphi 0, %s31
      %s35 = sphi 0, %s34
      %s51 = sphi 0, %s35
      %s57 = sphi 0, %s59
      %s60 = sphi 0, %s57
      %s61 = sphi 0, %s60
      %s77 = sphi 0, %s61
      %s81 = sphi 0, %s81
      %s83 = sphi 0, %s81
      %s84 = sphi 0, %s83
      %s98 = sphi 0, %s84
      %s102 = sphi 0, %s102
      %s104 = sphi 0, %s102
      %s105 = sphi 0, %s104
      %s119 = sphi 0, %s105
      %s123 = sphi 0, %s123
      %s125 = sphi 0, %s123
      %s126 = sphi 0, %s125
      %s140 = sphi 0, %s126
      %s144 = sphi 0, %s144
      %s146 = sphi 0, %s144
      %s147 = sphi 0, %s146
      %s161 = sphi 0, %s147
      %s167 = sphi 0, %s169
      %s170 = sphi 0, %s167
      %s171 = sphi 0, %s170
      %s187 = sphi 0, %s171
    $region4: #{tpu_custom_call.1} parent=1 // loop_header_branch
      %24 = sbr.rel (%p22) target = $region8
    $region5: #{tpu_custom_call.1} parent=1 // loop_body
      %s26 = ssub.s32 %s21, 1
      %s27 = ssub.s32 %s21, 2
      %s28 = sadd.s32 %s21, 1
      %s29 = ssub.s32 %s21, %s28
      %p30 = scmp.eq.s32.totalorder %s29, 0
      %s32 = sadd.s32 %s31, 1
      %s33 = scalar_select %p30, %s31, %s32
      %p36 = pneg %p30
      %p37 = scmp.eq.s32.totalorder %s21, 1
      %p38 = por %p36, %p37
      %p39 = scmp.ne.s32.totalorder %s31, %s34
      %p40 = scmp.eq.s32.totalorder %s21, 0
      %p41 = por %p39, %p40
      %p42 = scmp.ne.s32.totalorder %s31, %s34
      %p43 = scmp.eq.s32.totalorder %s26, 1
      %p44 = por %p42, %p43
      %p45 = scmp.ne.s32.totalorder %s34, %s35
      %p46 = scmp.eq.s32.totalorder %s26, 0
      %p47 = por %p45, %p46
      %p48 = scmp.ne.s32.totalorder %s34, %s35
      %p49 = scmp.eq.s32.totalorder %s27, 1
      %p50 = por %p48, %p49
      %p52 = scmp.ne.s32.totalorder %s35, %s51
      %p53 = scmp.eq.s32.totalorder %s27, 0
      %p54 = por %p52, %p53
      %s55 = ssub.s32 %s21, %s28
      %p56 = scmp.eq.s32.totalorder %s55, 0
      %s58 = sadd.s32 %s57, 1
      %s59 = scalar_select %p56, %s57, %s58
      %p62 = pneg %p56
      %p63 = scmp.eq.s32.totalorder %s21, 1
      %p64 = por %p62, %p63
      %p65 = scmp.ne.s32.totalorder %s57, %s60
      %p66 = scmp.eq.s32.totalorder %s21, 0
      %p67 = por %p65, %p66
      %p68 = scmp.ne.s32.totalorder %s57, %s60
      %p69 = scmp.eq.s32.totalorder %s26, 1
      %p70 = por %p68, %p69
      %p71 = scmp.ne.s32.totalorder %s60, %s61
      %p72 = scmp.eq.s32.totalorder %s26, 0
      %p73 = por %p71, %p72
      %p74 = scmp.ne.s32.totalorder %s60, %s61
      %p75 = scmp.eq.s32.totalorder %s27, 1
      %p76 = por %p74, %p75
      %p78 = scmp.ne.s32.totalorder %s61, %s77
      %p79 = scmp.eq.s32.totalorder %s27, 0
      %p80 = por %p78, %p79
      %s82 = sadd.s32 %s81, 1
      %p85 = scmp.eq.s32.totalorder %s21, 1
      %p86 = scmp.ne.s32.totalorder %s81, %s83
      %p87 = scmp.eq.s32.totalorder %s21, 0
      %p88 = por %p86, %p87
      %p89 = scmp.ne.s32.totalorder %s81, %s83
      %p90 = scmp.eq.s32.totalorder %s26, 1
      %p91 = por %p89, %p90
      %p92 = scmp.ne.s32.totalorder %s83, %s84
      %p93 = scmp.eq.s32.totalorder %s26, 0
      %p94 = por %p92, %p93
      %p95 = scmp.ne.s32.totalorder %s83, %s84
      %p96 = scmp.eq.s32.totalorder %s27, 1
      %p97 = por %p95, %p96
      %p99 = scmp.ne.s32.totalorder %s84, %s98
      %p100 = scmp.eq.s32.totalorder %s27, 0
      %p101 = por %p99, %p100
      %s103 = sadd.s32 %s102, 1
      %p106 = scmp.eq.s32.totalorder %s21, 1
      %p107 = scmp.ne.s32.totalorder %s102, %s104
      %p108 = scmp.eq.s32.totalorder %s21, 0
      %p109 = por %p107, %p108
      %p110 = scmp.ne.s32.totalorder %s102, %s104
      %p111 = scmp.eq.s32.totalorder %s26, 1
      %p112 = por %p110, %p111
      %p113 = scmp.ne.s32.totalorder %s104, %s105
      %p114 = scmp.eq.s32.totalorder %s26, 0
      %p115 = por %p113, %p114
      %p116 = scmp.ne.s32.totalorder %s104, %s105
      %p117 = scmp.eq.s32.totalorder %s27, 1
      %p118 = por %p116, %p117
      %p120 = scmp.ne.s32.totalorder %s105, %s119
      %p121 = scmp.eq.s32.totalorder %s27, 0
      %p122 = por %p120, %p121
      %s124 = sadd.s32 %s123, 1
      %p127 = scmp.eq.s32.totalorder %s21, 1
      %p128 = scmp.ne.s32.totalorder %s123, %s125
      %p129 = scmp.eq.s32.totalorder %s21, 0
      %p130 = por %p128, %p129
      %p131 = scmp.ne.s32.totalorder %s123, %s125
      %p132 = scmp.eq.s32.totalorder %s26, 1
      %p133 = por %p131, %p132
      %p134 = scmp.ne.s32.totalorder %s125, %s126
      %p135 = scmp.eq.s32.totalorder %s26, 0
      %p136 = por %p134, %p135
      %p137 = scmp.ne.s32.totalorder %s125, %s126
      %p138 = scmp.eq.s32.totalorder %s27, 1
      %p139 = por %p137, %p138
      %p141 = scmp.ne.s32.totalorder %s126, %s140
      %p142 = scmp.eq.s32.totalorder %s27, 0
      %p143 = por %p141, %p142
      %s145 = sadd.s32 %s144, 1
      %p148 = scmp.eq.s32.totalorder %s21, 1
      %p149 = scmp.ne.s32.totalorder %s144, %s146
      %p150 = scmp.eq.s32.totalorder %s21, 0
      %p151 = por %p149, %p150
      %p152 = scmp.ne.s32.totalorder %s144, %s146
      %p153 = scmp.eq.s32.totalorder %s26, 1
      %p154 = por %p152, %p153
      %p155 = scmp.ne.s32.totalorder %s146, %s147
      %p156 = scmp.eq.s32.totalorder %s26, 0
      %p157 = por %p155, %p156
      %p158 = scmp.ne.s32.totalorder %s146, %s147
      %p159 = scmp.eq.s32.totalorder %s27, 1
      %p160 = por %p158, %p159
      %p162 = scmp.ne.s32.totalorder %s147, %s161
      %p163 = scmp.eq.s32.totalorder %s27, 0
      %p164 = por %p162, %p163
      %s165 = ssub.s32 %s21, %s28
      %p166 = scmp.eq.s32.totalorder %s165, 0
      %s168 = sadd.s32 %s167, 1
      %s169 = scalar_select %p166, %s167, %s168
      %p172 = pneg %p166
      %p173 = scmp.eq.s32.totalorder %s21, 1
      %p174 = por %p172, %p173
      %p175 = scmp.ne.s32.totalorder %s167, %s170
      %p176 = scmp.eq.s32.totalorder %s21, 0
      %p177 = por %p175, %p176
      %p178 = scmp.ne.s32.totalorder %s167, %s170
      %p179 = scmp.eq.s32.totalorder %s26, 1
      %p180 = por %p178, %p179
      %p181 = scmp.ne.s32.totalorder %s170, %s171
      %p182 = scmp.eq.s32.totalorder %s26, 0
      %p183 = por %p181, %p182
      %p184 = scmp.ne.s32.totalorder %s170, %s171
      %p185 = scmp.eq.s32.totalorder %s27, 1
      %p186 = por %p184, %p185
      %p188 = scmp.ne.s32.totalorder %s171, %s187
      %p189 = scmp.eq.s32.totalorder %s27, 0
      %p190 = por %p188, %p189
      %p191 = scmp.le.s32.totalorder 1, %s21
      %p192 = scmp.lt.s32.totalorder %s21, 3
      %p193 = pnand %p191, %p192
      %p194 = pneg %p193
      // Predicated region
      $region9: #{tpu_custom_call.1} parent=5 // pred_check
        _
      $region10: #{tpu_custom_call.1} parent=5 // pred_check_branch
        %196 = sbr.rel (%p193) target = $region12
      $region11: #{tpu_custom_call.1} parent=5 // pred_region
        %s197 = ssub.s32 %s21, 1
        // Predicated region
        $region13: #{tpu_custom_call.1} parent=11 // pred_check
          %p198 = pneg %p94
        $region14: #{tpu_custom_call.1} parent=11 // pred_check_branch
          %200 = sbr.rel (%p198) target = $region16
        $region15: #{tpu_custom_call.1} parent=11 // pred_region
          %202 = vsyncadd [#allocation6], 0
          %s203 = sshll.u32 %s2, 4
          %s204 = int_to_ptr.hbm [resolvable:$true] %s203
          %s205 = sshll.u32 [#allocation7], 4
          %s206 = int_to_ptr.vmem [resolvable:$true] %s205
          %211 = dma.hbm_to_vmem [thread:$0]  %s204, 512, %s206, [#allocation6], 128, 128, 8
        $region16: #{tpu_custom_call.1} parent=11 // pred_fallthru
          _
        // Predicated region
        $region17: #{tpu_custom_call.1} parent=11 // pred_check
          %p212 = pneg %p115
        $region18: #{tpu_custom_call.1} parent=11 // pred_check_branch
          %214 = sbr.rel (%p212) target = $region20
        $region19: #{tpu_custom_call.1} parent=11 // pred_region
          _
        $region20: #{tpu_custom_call.1} parent=11 // pred_fallthru
          _
        // Predicated region
        $region21: #{tpu_custom_call.1} parent=11 // pred_check
          %p215 = pneg %p136
        $region22: #{tpu_custom_call.1} parent=11 // pred_check_branch
          %217 = sbr.rel (%p215) target = $region24
        $region23: #{tpu_custom_call.1} parent=11 // pred_region
          _
        $region24: #{tpu_custom_call.1} parent=11 // pred_fallthru
          _
        // Predicated region
        $region25: #{tpu_custom_call.1} parent=11 // pred_check
          %p218 = pneg %p157
        $region26: #{tpu_custom_call.1} parent=11 // pred_check_branch
          %220 = sbr.rel (%p218) target = $region28
        $region27: #{tpu_custom_call.1} parent=11 // pred_region
          _
        $region28: #{tpu_custom_call.1} parent=11 // pred_fallthru
          _
      $region12: #{tpu_custom_call.1} parent=5 // pred_fallthru
        _
      %p221 = scmp.lt.s32.totalorder %s21, 2
      // Predicated region
      $region29: #{tpu_custom_call.1} parent=5 // pred_check
        %p222 = pneg %p221
      $region30: #{tpu_custom_call.1} parent=5 // pred_check_branch
        %224 = sbr.rel (%p222) target = $region32
      $region31: #{tpu_custom_call.1} parent=5 // pred_region
        // Predicated region
        $region33: #{tpu_custom_call.1} parent=31 // pred_check
          %p225 = pneg %p41
        $region34: #{tpu_custom_call.1} parent=31 // pred_check_branch
          %227 = sbr.rel (%p225) target = $region36
        $region35: #{tpu_custom_call.1} parent=31 // pred_region
          %s228 = sand.u32 %s31, 1
          %s229 = scalar_lea.sflag [#allocation3], %s228
          %s230 = sand.u32 %s31, 1
          %s231 = smul.addr %s230, 8
          %s232 = scalar_lea.vmem [#allocation2], %s231
          %234 = vsyncadd %s229, 0
          %s235 = smul.addr %s21, 8
          %s236 = scalar_lea.hbm %s0, %s235
          %s238 = sshll.u32 %s236, 4
          %s239 = int_to_ptr.hbm [resolvable:$true] %s238
          %s240 = sshll.u32 %s232, 4
          %s241 = int_to_ptr.vmem [resolvable:$true] %s240
          %243 = dma.hbm_to_vmem [thread:$0]  %s239, 128, %s241, %s229
        $region36: #{tpu_custom_call.1} parent=31 // pred_fallthru
          _
        // Predicated region
        $region37: #{tpu_custom_call.1} parent=31 // pred_check
          %p244 = pneg %p67
        $region38: #{tpu_custom_call.1} parent=31 // pred_check_branch
          %246 = sbr.rel (%p244) target = $region40
        $region39: #{tpu_custom_call.1} parent=31 // pred_region
          %s247 = sand.u32 %s21, 1
          %s248 = scalar_lea.sflag [#allocation6], %s247
          %s249 = sand.u32 %s57, 1
          %s250 = smul.addr %s249, 8
          %s251 = scalar_lea.vmem [#allocation5], %s250
          %253 = vsyncadd %s248, 0
          %s254 = smul.addr %s21, 8
          %s255 = scalar_lea.hbm %s1, %s254
          %s257 = sshll.u32 %s255, 4
          %s258 = int_to_ptr.hbm [resolvable:$true] %s257
          %s259 = sshll.u32 %s251, 4
          %s260 = int_to_ptr.vmem [resolvable:$true] %s259
          %262 = dma.hbm_to_vmem [thread:$0]  %s258, 128, %s260, %s248
        $region40: #{tpu_custom_call.1} parent=31 // pred_fallthru
          _
      $region32: #{tpu_custom_call.1} parent=5 // pred_fallthru
        _
      %p263 = scmp.le.s32.totalorder 1, %s21
      %p264 = scmp.lt.s32.totalorder %s21, 3
      %p265 = pnand %p263, %p264
      %p266 = pneg %p265
      // Predicated region
      $region41: #{tpu_custom_call.1} parent=5 // pred_check
        _
      $region42: #{tpu_custom_call.1} parent=5 // pred_check_branch
        %268 = sbr.rel (%p265) target = $region44
      $region43: #{tpu_custom_call.1} parent=5 // pred_region
        %s269 = ssub.s32 %s21, 1
        %s270 = sand.u32 %s34, 1
        %s271 = scalar_lea.sflag [#allocation3], %s270
        %s272 = sand.u32 %s34, 1
        %s273 = smul.addr %s272, 8
        %s274 = scalar_lea.vmem [#allocation2], %s273
        // Predicated region
        $region45: #{tpu_custom_call.1} parent=43 // pred_check
          %p275 = pneg %p47
        $region46: #{tpu_custom_call.1} parent=43 // pred_check_branch
          %277 = sbr.rel (%p275) target = $region48
        $region47: #{tpu_custom_call.1} parent=43 // pred_region
          %279 = dma.done %s271, 128
        $region48: #{tpu_custom_call.1} parent=43 // pred_fallthru
          _
        %s280 = sand.u32 %s26, 1
        %s281 = scalar_lea.sflag [#allocation6], %s280
        %s282 = sand.u32 %s60, 1
        %s283 = smul.addr %s282, 8
        %s284 = scalar_lea.vmem [#allocation5], %s283
        // Predicated region
        $region49: #{tpu_custom_call.1} parent=43 // pred_check
          %p285 = pneg %p73
        $region50: #{tpu_custom_call.1} parent=43 // pred_check_branch
          %287 = sbr.rel (%p285) target = $region52
        $region51: #{tpu_custom_call.1} parent=43 // pred_region
          %289 = dma.done %s281, 128
        $region52: #{tpu_custom_call.1} parent=43 // pred_fallthru
          _
        // Predicated region
        $region53: #{tpu_custom_call.1} parent=43 // pred_check
          %p290 = pneg %p94
        $region54: #{tpu_custom_call.1} parent=43 // pred_check_branch
          %292 = sbr.rel (%p290) target = $region56
        $region55: #{tpu_custom_call.1} parent=43 // pred_region
          %294 = dma.done [#allocation6], 512
        $region56: #{tpu_custom_call.1} parent=43 // pred_fallthru
          _
        %s295 = sand.u32 %s34, 1
        %s296 = scalar_lea.sflag [#allocation3], %s295
        %s297 = sand.u32 %s34, 1
        %s298 = smul.addr %s297, 8
        %s299 = scalar_lea.vmem [#allocation2], %s298
        %p300 = pneg %p47
        %p301 = pneg %p44
        %s302 = sand.u32 %s26, 1
        %s303 = scalar_lea.sflag [#allocation6], %s302
        %s304 = sand.u32 %s60, 1
        %s305 = smul.addr %s304, 8
        %s306 = scalar_lea.vmem [#allocation5], %s305
        %p307 = pneg %p73
        %p308 = pneg %p70
        %p309 = pneg %p94
        %p310 = pneg %p91
        %p311 = pneg %p115
        %p312 = pneg %p112
        %p313 = pneg %p136
        %p314 = pneg %p133
        %p315 = pneg %p157
        %p316 = pneg %p154
        %p317 = pneg %p183
        %p318 = pneg %p180
        %s319 = sand.u32 %s170, 1
        %s320 = scalar_lea.sflag [#allocation4], %s319
        %s321 = sand.u32 %s170, 1
        %s322 = smul.addr %s321, 8
        %s323 = scalar_lea.vmem [#allocation8], %s322
        %v324 = vld [vmem:[%s274] sm:$0xff]
        %v325 = vld [vmem:[#allocation7] sm:$0xff]
        %v326 = vld [vmem:[#allocation7 + $0x8] sm:$0xff]
        %v327 = vld [vmem:[#allocation7 + $0x10] sm:$0xff]
        %v328 = vld [vmem:[#allocation7 + $0x18] sm:$0xff]
        %v329 = vld [vmem:[%s284] sm:$0xff]
        %v330 = vld [vmem:[%s3] sm:$0x1]
        %v332 = vperm.slane %v330, 0
        %v334 = vadd.f32 %v329, %v332
        %vm335 = vcmask 261120
        %v337 = vsel %vm335, %v324, 0
        %339 = vmatpush.msra.mxu0 0.0
        %340 = vmatpush.msra.mxu0 0.0
        %341 = vmatpush.msra.mxu0 0.0
        %342 = vmatpush.msra.mxu0 0.0
        %343 = vmatpush.msra.mxu0 0.0
        %344 = vmatpush.msra.mxu0 0.0
        %345 = vmatpush.msra.mxu0 0.0
        %346 = vmatpush.msra.mxu0 0.0
        %347 = vmatpush.msra.mxu0 0.0
        %348 = vmatpush.msra.mxu0 0.0
        %349 = vmatpush.msra.mxu0 0.0
        %350 = vmatpush.msra.mxu0 0.0
        %351 = vmatpush.msra.mxu0 %v328
        %352 = vmatpush.msra.mxu0 %v327
        %353 = vmatpush.msra.mxu0 %v326
        %354 = vmatpush.msra.mxu0 %v325
        %355 = vmatmul.f32.gmra.mxu0 %v337
        %v356 = vpop.f32.mrf.mxu0
        %v357 = vadd.f32 %v334, %v356
        %358 = vdwg.mxu0
        %v359 = vsel %vm335, %v357, 0.0
        %360 = vadd.xlane.f32.xlu0 %v359
        %v361 = vpop.xlane.xlu0 %360
        %v362 = vrcp.pop 32.0
        %v363 = vmul.f32 32.0, %v362
        %v364 = vsub.f32 1.0, %v363
        %v365 = vmul.f32 %v362, %v364
        %v366 = vadd.f32 %v362, %v365
        %vm367 = vweird.f32 %v362
        %v368 = vsel %vm367, %v362, %v366
        %v369 = vmul.f32 %v361, %v368
        %v370 = vmul.f32 %v357, %v357
        %v371 = vsel %vm335, %v370, 0.0
        %372 = vadd.xlane.f32.xlu0 %v371
        %v373 = vpop.xlane.xlu0 %372
        %v374 = vmul.f32 %v373, %v368
        %v375 = vmul.f32 %v369, %v369
        %v376 = vsub.f32 %v374, %v375
        %v377 = vmax.f32 %v376, 0.0
        %v378 = vadd.f32 %v377, 1e-07
        %v379 = vrsqrt.pop %v378
        %v380 = vmul.f32 %v379, %v378
        %v381 = vmul.f32 %v380, %v379
        %v382 = vmul.f32 0.5, %v381
        %v383 = vsub.f32 1.5, %v382
        %v384 = vmul.f32 %v379, %v383
        %vm385 = vweird.f32 %v378
        %vm386 = vweird.f32 %v379
        %vm387 = vmor %vm385, %vm386
        %v388 = vsel %vm387, %v379, %v384
        %v389 = vld [vmem:[%s4] sm:$0x1]
        %v390 = vsub.f32 %v357, %v369
        %v391 = vmul.f32 %v390, %v388
        %v393 = vperm.slane %v389, 0
        %v395 = vmul.f32 %v393, %v391
        %v396 = vld [vmem:[%s5] sm:$0x1]
        %v398 = vperm.slane %v396, 0
        %v400 = vadd.f32 %v395, %v398
        %401 = vst.msk [vmem:[%s323] sm:$0xff] %vm335, %v400
        %s402 = sand.u32 %s170, 1
        %s403 = scalar_lea.sflag [#allocation4], %s402
        %s404 = sand.u32 %s170, 1
        %s405 = smul.addr %s404, 8
        %s406 = scalar_lea.vmem [#allocation8], %s405
        // Predicated region
        $region57: #{tpu_custom_call.1} parent=43 // pred_check
          %p407 = pneg %p180
        $region58: #{tpu_custom_call.1} parent=43 // pred_check_branch
          %409 = sbr.rel (%p407) target = $region60
        $region59: #{tpu_custom_call.1} parent=43 // pred_region
          %411 = vsyncadd %s403, 0
          %s412 = smul.addr %s26, 8
          %s413 = scalar_lea.hbm %s6, %s412
          %s415 = sshll.u32 %s406, 4
          %s416 = int_to_ptr.vmem [resolvable:$true] %s415
          %s417 = sshll.u32 %s413, 4
          %s418 = int_to_ptr.hbm [resolvable:$true] %s417
          %420 = dma.vmem_to_hbm [thread:$0]  %s416, 128, %s418, %s403
        $region60: #{tpu_custom_call.1} parent=43 // pred_fallthru
          _
      $region44: #{tpu_custom_call.1} parent=5 // pred_fallthru
        _
      %p421 = scmp.le.s32.totalorder 2, %s21
      // Predicated region
      $region61: #{tpu_custom_call.1} parent=5 // pred_check
        %p422 = pneg %p421
      $region62: #{tpu_custom_call.1} parent=5 // pred_check_branch
        %424 = sbr.rel (%p422) target = $region64
      $region63: #{tpu_custom_call.1} parent=5 // pred_region
        %s425 = ssub.s32 %s21, 2
        // Predicated region
        $region65: #{tpu_custom_call.1} parent=63 // pred_check
          %p426 = pneg %p186
        $region66: #{tpu_custom_call.1} parent=63 // pred_check_branch
          %428 = sbr.rel (%p426) target = $region68
        $region67: #{tpu_custom_call.1} parent=63 // pred_region
          %s429 = sand.u32 %s171, 1
          %s430 = scalar_lea.sflag [#allocation4], %s429
          %s431 = sand.u32 %s171, 1
          %s432 = smul.addr %s431, 8
          %s433 = scalar_lea.vmem [#allocation8], %s432
          %435 = dma.done %s430, 128
        $region68: #{tpu_custom_call.1} parent=63 // pred_fallthru
          _
      $region64: #{tpu_custom_call.1} parent=5 // pred_fallthru
        _
    $region6: #{tpu_custom_call.1} parent=1 // loop_footer
      %s25 = sadd.s32 1, %s21
    $region7: #{tpu_custom_call.1} parent=1 // loop_footer_branch
      %20 = sbr.rel target = $region3
    $region8: #{tpu_custom_call.1} parent=1 // loop_exit
      _
    %436 = vsyncpa [#allocation3], 1
    %s437 = scalar_lea.sflag [#allocation3], 1
    %438 = vsyncpa %s437, 1
    %439 = vsyncpa [#allocation6], 1
    %s440 = scalar_lea.sflag [#allocation6], 1
    %441 = vsyncpa %s440, 1
    %442 = vsyncpa [#allocation4], 1
    %s443 = scalar_lea.sflag [#allocation4], 1
    %444 = vsyncpa %s443, 1

</llo_original>
